<compile_context>
chip_gen: v6e
topology: v6e:2x2x1
jax: 0.10.0
libtpu: 0.0.40
codegen_flags: <defaults>
</compile_context>

<pallas_src>
import functools

import jax
import jax.numpy as jnp
from jax import lax
from jax.experimental import pallas as pl
from jax.experimental.pallas import tpu as pltpu


def _round_up(x, m):
    return ((x + m - 1) // m) * m


@functools.lru_cache(maxsize=None)
def _vmem_limit_bytes():
    """Scoped VMEM limit: ~60% of physical VMEM (headroom for compiler scratch
    and double buffers), capped at 64 MiB. Falls back to a conservative 40 MiB
    (safe on v5e/v6e's 128 MiB and v7x's 64 MiB) if the HW query fails."""
    cap = None
    try:
        cap = int(getattr(pltpu.get_tpu_info(), "vmem_capacity_bytes", 0)) or None
    except Exception:
        cap = None
    if cap is None:
        return 40 * 1024 * 1024
    return max(16 * 1024 * 1024, min(int(cap * 0.6), 64 * 1024 * 1024))


def _choose_tile(dim, target, multiple):
    """Pick a tile size (multiple of `multiple`) for a dimension of size `dim`.

    If `dim` fits in `target`, use the whole (rounded-up) dimension. Otherwise
    scan multiples of `multiple` in [target/4, target] and pick the one that
    minimizes the padded total round_up(dim, tile), preferring larger tiles.
    The wrappers pad arrays up to a tile multiple, so exact divisibility is
    never required and tiles never degrade to degenerate sizes."""
    if dim <= target:
        return _round_up(dim, multiple)
    hi = max((target // multiple) * multiple, multiple)
    lo = max((hi // 4 // multiple) * multiple, multiple)
    best_tile, best_padded = hi, _round_up(dim, hi)
    t = hi - multiple
    while t >= lo:
        padded = _round_up(dim, t)
        if padded < best_padded:
            best_tile, best_padded = t, padded
        t -= multiple
    return best_tile


# ----------------------------------------------------------------------------
# Kernel 1: tiled linear layer  y = x @ w + b   (x: [M, K], w: [K, N], b: [1, N])
# ----------------------------------------------------------------------------
def _linear_kernel(x_ref, w_ref, b_ref, o_ref, acc_ref):
    k = pl.program_id(2)

    @pl.when(k == 0)
    def _init():
        acc_ref[...] = jnp.zeros_like(acc_ref)

    acc_ref[...] += jnp.dot(x_ref[...], w_ref[...],
                            preferred_element_type=jnp.float32)

    @pl.when(k == pl.num_programs(2) - 1)
    def _finalize():
        o_ref[...] = (acc_ref[...] + b_ref[...].astype(jnp.float32)).astype(o_ref.dtype)


def linear(x2d, w, b, *, tm=512, tn=512, tk=512):
    """y = x2d @ w + b with a tiled, double-buffered Pallas matmul.

    Ragged shapes are zero-padded to tile multiples in the wrapper (zero K/N
    padding is exact; padded M rows / N cols are sliced off afterwards)."""
    M, K = x2d.shape
    K2, N = w.shape
    assert K == K2
    tm_e = _choose_tile(M, tm, 8)      # second-minor of x / out
    tk_e = _choose_tile(K, tk, 128)    # minor of x / second-minor of w
    tn_e = _choose_tile(N, tn, 128)    # minor of w / b / out
    Mp, Kp, Np = _round_up(M, tm_e), _round_up(K, tk_e), _round_up(N, tn_e)
    if (Mp, Kp) != (M, K):
        x2d = jnp.pad(x2d, ((0, Mp - M), (0, Kp - K)))
    if (Kp, Np) != (K, N):
        w = jnp.pad(w, ((0, Kp - K), (0, Np - N)))
    b2d = b.reshape(1, N)
    if Np != N:
        b2d = jnp.pad(b2d, ((0, 0), (0, Np - N)))

    out = pl.pallas_call(
        _linear_kernel,
        out_shape=jax.ShapeDtypeStruct((Mp, Np), x2d.dtype),
        grid_spec=pltpu.PrefetchScalarGridSpec(
            num_scalar_prefetch=0,
            grid=(Mp // tm_e, Np // tn_e, Kp // tk_e),
            in_specs=[
                pl.BlockSpec((tm_e, tk_e), lambda i, j, k: (i, k)),
                pl.BlockSpec((tk_e, tn_e), lambda i, j, k: (k, j)),
                pl.BlockSpec((1, tn_e), lambda i, j, k: (0, j)),
            ],
            out_specs=pl.BlockSpec((tm_e, tn_e), lambda i, j, k: (i, j)),
            scratch_shapes=[pltpu.VMEM((tm_e, tn_e), jnp.float32)],
        ),
        compiler_params=pltpu.CompilerParams(
            dimension_semantics=("parallel", "parallel", "arbitrary"),
            vmem_limit_bytes=_vmem_limit_bytes(),
        ),
    )(x2d, w, b2d)
    if (Mp, Np) != (M, N):
        out = out[:M, :N]
    return out


# ----------------------------------------------------------------------------
# Kernel 2: fused multi-head attention + output projection.
#   grid = (B, S_pad // tq). Each step handles one batch element and one
#   tq-row query tile against the full (padded) key/value slabs, then applies
#   the output projection before the final lane-dense store.
# ----------------------------------------------------------------------------
def _mha_proj_kernel(q_ref, k_ref, v_ref, wp_ref, bp_ref, o_ref, acc_ref, *,
                     num_heads, head_dim, seq_len):
    # q_ref : [tq, d_sec]     query rows (softmax scale pre-folded into W_q)
    # k_ref : [S_pad, d_sec]  keys of the whole (padded) sequence
    # v_ref : [S_pad, d_sec]  values
    # wp_ref: [D, D]          output projection weight (resident across grid)
    # bp_ref: [1, D]          output projection bias
    # o_ref : [tq, D]         post-projection output rows
    # acc_ref: [tq, D] f32    per-head attention results, written incrementally
    s_pad = k_ref.shape[0]
    mask_kv = s_pad != seq_len            # static: only when S was padded
    if mask_kv:
        col = lax.broadcasted_iota(jnp.int32, (1, s_pad), 1)
        kv_valid = col < seq_len

    # TODO(synk): process heads in pairs as [*, 128]-lane slabs when head_dim==64
    # to avoid masked 64-lane loads/stores (minor VALU/XLU filler win).
    for h in range(num_heads):
        lo = h * head_dim
        q_h = q_ref[:, lo:lo + head_dim]
        k_h = k_ref[:, lo:lo + head_dim]
        v_h = v_ref[:, lo:lo + head_dim]
        # q @ k^T without materializing a transpose (contract last dim of both).
        s = lax.dot_general(q_h, k_h, (((1,), (1,)), ((), ())),
                            preferred_element_type=jnp.float32)    # [tq, S_pad]
        if mask_kv:
            s = jnp.where(kv_valid, s, -1e30)
        m = jnp.max(s, axis=-1, keepdims=True)
        p = jnp.exp(s - m)
        denom = jnp.sum(p, axis=-1, keepdims=True)
        # TODO(synk): attn_drop omitted -- rate is 0.0 (eval mode) => identity.
        o_h = jnp.dot(p.astype(v_h.dtype), v_h,
                      preferred_element_type=jnp.float32)           # [tq, hd]
        # Deferred softmax normalization: O(S*hd) multiplies instead of O(S^2);
        # the reciprocal runs on the EUP slot (~free).
        acc_ref[:, lo:lo + head_dim] = o_h * pl.reciprocal(denom, approx=True)

    # Fused output projection epilogue: saves a full HBM round trip of [B,S,D].
    out = jnp.dot(acc_ref[...].astype(wp_ref.dtype), wp_ref[...],
                  preferred_element_type=jnp.float32)
    # proj_drop (rate 0.0) is identity.
    o_ref[...] = (out + bp_ref[...].astype(jnp.float32)).astype(o_ref.dtype)


def fused_mha_proj(qkv, w_proj, b_proj2d, *, num_heads, embed_dim, d_sec,
                   out_dtype, tq_target=256):
    """qkv: [B, S, 3*d_sec] in the padded (q | k | v) section layout."""
    B, S, width = qkv.shape
    assert width == 3 * d_sec
    D = embed_dim
    head_dim = D // num_heads
    tq = _choose_tile(S, tq_target, 8)
    S_pad = _round_up(S, tq)
    if S_pad != S:
        qkv = jnp.pad(qkv, ((0, 0), (0, S_pad - S), (0, 0)))

    kernel = functools.partial(_mha_proj_kernel, num_heads=num_heads,
                               head_dim=head_dim, seq_len=S)
    # TODO(synk): for very long sequences a full flash-style (q-tile, kv-tile)
    # grid with online softmax would cap the K/V slab and [tq, S] score memory.
    out = pl.pallas_call(
        kernel,
        out_shape=jax.ShapeDtypeStruct((B, S_pad, D), out_dtype),
        grid_spec=pltpu.PrefetchScalarGridSpec(
            num_scalar_prefetch=0,
            grid=(B, S_pad // tq),
            in_specs=[
                # The same qkv array is passed three times; block index along
                # the last dim selects the section: 0 -> Q, 1 -> K, 2 -> V.
                pl.BlockSpec((None, tq, d_sec), lambda b, qi: (b, qi, 0)),
                pl.BlockSpec((None, S_pad, d_sec), lambda b, qi: (b, 0, 1)),
                pl.BlockSpec((None, S_pad, d_sec), lambda b, qi: (b, 0, 2)),
                pl.BlockSpec((D, D), lambda b, qi: (0, 0)),    # W_proj (resident)
                pl.BlockSpec((1, D), lambda b, qi: (0, 0)),    # b_proj
            ],
            out_specs=pl.BlockSpec((None, tq, D), lambda b, qi: (b, qi, 0)),
            scratch_shapes=[pltpu.VMEM((tq, D), jnp.float32)],
        ),
        compiler_params=pltpu.CompilerParams(
            dimension_semantics=("parallel", "parallel"),   # B x q-tiles -> megacore
            vmem_limit_bytes=_vmem_limit_bytes(),
        ),
    )(qkv, qkv, qkv, w_proj, b_proj2d)
    if S_pad != S:
        out = out[:, :S, :]
    return out


# ----------------------------------------------------------------------------
# Parameter preparation + full Attention forward (rope=None, eval mode)
# ----------------------------------------------------------------------------
def prepare_attention_params(params, embed_dim, num_heads, compute_dtype=None):
    """One-time parameter prep (weight transforms, zero runtime cost).

    Weight layout assumption: w_qkv is [D, 3D] = W^T with columns ordered
    (q | k | v) and heads contiguous inside each section -- exactly the PyTorch
    reshape (B, S, 3, H, head_dim). Changing that layout requires changing the
    per-head slicing in the attention kernel."""
    D = embed_dim
    H = num_heads
    assert D % H == 0, "embed_dim must be divisible by num_heads"
    head_dim = D // H
    scale = float(head_dim) ** -0.5

    w_qkv, b_qkv = params["w_qkv"], params["b_qkv"]
    w_proj, b_proj = params["w_proj"], params["b_proj"]
    assert w_qkv.shape == (D, 3 * D) and w_proj.shape == (D, D)

    d_sec = _round_up(D, 128)      # per-section lane width of the padded qkv layout
    pad = d_sec - D

    def pad_last(a):
        if pad == 0:
            return a
        return jnp.pad(a, [(0, 0)] * (a.ndim - 1) + [(0, pad)])

    # Fold the softmax scale into the Q section (weights and bias).
    w_qkv_p = jnp.concatenate(
        [pad_last(w_qkv[:, :D] * scale),
         pad_last(w_qkv[:, D:2 * D]),
         pad_last(w_qkv[:, 2 * D:])], axis=-1)
    b_qkv_p = jnp.concatenate(
        [pad_last(b_qkv[:D] * scale),
         pad_last(b_qkv[D:2 * D]),
         pad_last(b_qkv[2 * D:])], axis=-1)
    b_proj2d = b_proj.reshape(1, D)

    if compute_dtype is not None:
        w_qkv_p = w_qkv_p.astype(compute_dtype)
        b_qkv_p = b_qkv_p.astype(compute_dtype)
        w_proj = w_proj.astype(compute_dtype)
        b_proj2d = b_proj2d.astype(compute_dtype)

    return dict(w_qkv=w_qkv_p, b_qkv=b_qkv_p, w_proj=w_proj, b_proj=b_proj2d,
                embed_dim=D, num_heads=H, d_sec=d_sec, compute_dtype=compute_dtype)


def attention_forward(x, prepared, xpos=None):
    """Forward pass of the CroCo `Attention` module (rope=None, eval mode)."""
    del xpos  # rope is None in this configuration -> xpos unused
    B, S, D = x.shape
    assert D == prepared["embed_dim"]
    d_sec = prepared["d_sec"]
    cd = prepared["compute_dtype"]

    x2d = x.reshape(B * S, D)
    if cd is not None:
        x2d = x2d.astype(cd)

    # 1) qkv = x @ W_qkv + b_qkv  (padded (q|k|v) section layout)
    qkv = linear(x2d, prepared["w_qkv"], prepared["b_qkv"])       # [B*S, 3*d_sec]
    qkv = qkv.reshape(B, S, 3 * d_sec)                            # free reshape

    # 2+3) fused multi-head attention + output projection (+ bias)
    return fused_mha_proj(qkv, prepared["w_proj"], prepared["b_proj"],
                          num_heads=prepared["num_heads"], embed_dim=D,
                          d_sec=d_sec, out_dtype=x.dtype)


# ----------------------------------------------------------------------------
# Pure-JAX reference for validation
# ----------------------------------------------------------------------------
def attention_reference(x, params, num_heads):
    B, S, D = x.shape
    H = num_heads
    hd = D // H
    scale = float(hd) ** -0.5
    qkv = x @ params["w_qkv"] + params["b_qkv"]
    qkv = qkv.reshape(B, S, 3, H, hd)
    q = jnp.transpose(qkv[:, :, 0], (0, 2, 1, 3))
    k = jnp.transpose(qkv[:, :, 1], (0, 2, 1, 3))
    v = jnp.transpose(qkv[:, :, 2], (0, 2, 1, 3))
    s = jnp.einsum("bhqd,bhkd->bhqk", q, k) * scale
    p = jax.nn.softmax(s, axis=-1)
    out = jnp.einsum("bhqk,bhkd->bhqd", p, v)
    out = jnp.transpose(out, (0, 2, 1, 3)).reshape(B, S, D)
    return out @ params["w_proj"] + params["b_proj"]


if __name__ == "__main__":
    # Small shapes consistent with the module. S=12 deliberately exercises the
    # ragged-sequence padding + key-masking path of the attention kernel.
    B, S, D, H = 2, 12, 32, 4
    qkv_bias = False  # module default

    key = jax.random.PRNGKey(0)
    k_x, k_wqkv, k_bqkv, k_wproj, k_bproj = jax.random.split(key, 5)

    x = jax.random.normal(k_x, (B, S, D), dtype=jnp.float32)

    # Parameters stored as [in, out] = W^T (PyTorch Linear weight transposed).
    params = {
        "w_qkv": jax.random.normal(k_wqkv, (D, 3 * D), dtype=jnp.float32) * 0.05,
        "b_qkv": (jax.random.normal(k_bqkv, (3 * D,), dtype=jnp.float32) * 0.05
                  if qkv_bias else jnp.zeros((3 * D,), dtype=jnp.float32)),
        "w_proj": jax.random.normal(k_wproj, (D, D), dtype=jnp.float32) * 0.05,
        "b_proj": jax.random.normal(k_bproj, (D,), dtype=jnp.float32) * 0.05,
    }

    ref = attention_reference(x, params, num_heads=H)

    # --- f32 path: matches the PyTorch module's default precision -------------
    prep_f32 = prepare_attention_params(params, D, H, compute_dtype=None)
    out_f32 = jax.block_until_ready(attention_forward(x, prep_f32))
    assert out_f32.shape == (B, S, D)
    # Tolerance loosened slightly for the approx (EUP) reciprocal in the softmax.
    assert bool(jnp.allclose(out_f32, ref, atol=2e-3, rtol=2e-3)), "f32 mismatch"

    # --- bf16 MXU path: production configuration from the perf review ---------
    prep_bf16 = prepare_attention_params(params, D, H, compute_dtype=jnp.bfloat16)
    out_bf16 = jax.block_until_ready(attention_forward(x, prep_bf16))
    assert out_bf16.shape == (B, S, D)
    assert bool(jnp.all(jnp.isfinite(out_bf16)))
    assert bool(jnp.allclose(out_bf16, ref, atol=5e-2, rtol=5e-2)), "bf16 mismatch"

    print("KERNEL_OK")
</pallas_src>

<mosaic_0001>
module attributes {stable_mosaic.version = 11 : i64} {
  func.func @_linear_kernel(%arg0: i32, %arg1: i32, %arg2: i32, %arg3: memref<24x128xf32, #tpu.memory_space<vmem>>, %arg4: memref<128x384xf32, #tpu.memory_space<vmem>>, %arg5: memref<1x384xf32, #tpu.memory_space<vmem>>, %arg6: memref<24x384xf32, #tpu.memory_space<vmem>>, %arg7: memref<24x384xf32, #tpu.memory_space<vmem>>) attributes {dimension_semantics = [#tpu.dimension_semantics<parallel>, #tpu.dimension_semantics<parallel>, #tpu.dimension_semantics<arbitrary>], iteration_bounds = array<i64: 1, 1, 1>, scalar_prefetch = 0 : i64, scratch_operands = 1 : i64, tpu.core_type = #tpu.core_type<tc>, window_params = [{transform_indices = @transform_0, window_bounds = array<i64: 24, 128>}, {transform_indices = @transform_1, window_bounds = array<i64: 128, 384>}, {transform_indices = @transform_2, window_bounds = array<i64: 1, 384>}, {transform_indices = @transform_3, window_bounds = array<i64: 24, 384>}]} {
    %c0_i32 = arith.constant 0 : i32
    %0 = arith.cmpi eq, %arg2, %c0_i32 : i32
    %1 = arith.extui %0 : i1 to i32
    %c0_i32_0 = arith.constant 0 : i32
    %2 = arith.cmpi ne, %1, %c0_i32_0 : i32
    scf.if %2 {
      %cst_10 = arith.constant 0.000000e+00 : f32
      %12 = vector.broadcast %cst_10 : f32 to vector<24x384xf32>
      %c0_11 = arith.constant 0 : index
      %c0_12 = arith.constant 0 : index
      %13 = vector.load %arg7[%c0_11, %c0_12] : memref<24x384xf32, #tpu.memory_space<vmem>>, vector<24x384xf32>
      tpu.vector_store %arg7[%c0_11, %c0_12], %12 {strides = array<i32>} : memref<24x384xf32, #tpu.memory_space<vmem>>, vector<24x384xf32>,
    } else {
    }
    %c0 = arith.constant 0 : index
    %c0_1 = arith.constant 0 : index
    %3 = vector.load %arg7[%c0, %c0_1] : memref<24x384xf32, #tpu.memory_space<vmem>>, vector<24x384xf32>
    %c0_2 = arith.constant 0 : index
    %c0_3 = arith.constant 0 : index
    %4 = vector.load %arg3[%c0_2, %c0_3] : memref<24x128xf32, #tpu.memory_space<vmem>>, vector<24x128xf32>
    %c0_4 = arith.constant 0 : index
    %c0_5 = arith.constant 0 : index
    %5 = vector.load %arg4[%c0_4, %c0_5] : memref<128x384xf32, #tpu.memory_space<vmem>>, vector<128x384xf32>
    %cst = arith.constant dense<0.000000e+00> : vector<24x384xf32>
    %6 = tpu.matmul %4, %5, %cst {dimension_numbers = #tpu.dot_dimension_numbers<[1], [0], [0], [1], [0, 0, 1, 1], [], []>} : vector<24x128xf32>, vector<128x384xf32>, vector<24x384xf32> -> vector<24x384xf32>
    %7 = arith.addf %3, %6 : vector<24x384xf32>
    %c0_6 = arith.constant 0 : index
    %c0_7 = arith.constant 0 : index
    %8 = vector.load %arg7[%c0_6, %c0_7] : memref<24x384xf32, #tpu.memory_space<vmem>>, vector<24x384xf32>
    tpu.vector_store %arg7[%c0_6, %c0_7], %7 {strides = array<i32>} : memref<24x384xf32, #tpu.memory_space<vmem>>, vector<24x384xf32>,
    %c0_i32_8 = arith.constant 0 : i32
    %9 = arith.cmpi eq, %arg2, %c0_i32_8 : i32
    %10 = arith.extui %9 : i1 to i32
    %c0_i32_9 = arith.constant 0 : i32
    %11 = arith.cmpi ne, %10, %c0_i32_9 : i32
    scf.if %11 {
      %c0_10 = arith.constant 0 : index
      %c0_11 = arith.constant 0 : index
      %12 = vector.load %arg7[%c0_10, %c0_11] : memref<24x384xf32, #tpu.memory_space<vmem>>, vector<24x384xf32>
      %c0_12 = arith.constant 0 : index
      %c0_13 = arith.constant 0 : index
      %13 = vector.load %arg5[%c0_12, %c0_13] : memref<1x384xf32, #tpu.memory_space<vmem>>, vector<1x384xf32>
      %14 = vector.broadcast %13 : vector<1x384xf32> to vector<24x384xf32>
      %15 = arith.addf %12, %14 : vector<24x384xf32>
      %c0_14 = arith.constant 0 : index
      %c0_15 = arith.constant 0 : index
      %16 = vector.load %arg6[%c0_14, %c0_15] : memref<24x384xf32, #tpu.memory_space<vmem>>, vector<24x384xf32>
      tpu.vector_store %arg6[%c0_14, %c0_15], %15 {strides = array<i32>} : memref<24x384xf32, #tpu.memory_space<vmem>>, vector<24x384xf32>,
    } else {
    }
    return
  }
  func.func @transform_0(%arg0: i32, %arg1: i32, %arg2: i32) -> (i32, i32) {
    %c0_i32 = arith.constant 0 : i32
    return %arg0, %arg2 : i32, i32
  }
  func.func @transform_1(%arg0: i32, %arg1: i32, %arg2: i32) -> (i32, i32) {
    %c0_i32 = arith.constant 0 : i32
    return %arg2, %arg1 : i32, i32
  }
  func.func @transform_2(%arg0: i32, %arg1: i32, %arg2: i32) -> (i32, i32) {
    %c0_i32 = arith.constant 0 : i32
    %c0_i32_0 = arith.constant 0 : i32
    return %c0_i32, %arg1 : i32, i32
  }
  func.func @transform_3(%arg0: i32, %arg1: i32, %arg2: i32) -> (i32, i32) {
    %c0_i32 = arith.constant 0 : i32
    return %arg0, %arg1 : i32, i32
  }
}

</mosaic_0001>

<llo_original>
// kernel: tpu_custom_call.1
$region0: #{tpu_custom_call.1}
  #allocation0 [shape = 'u32[]', space=smem, size = 0x4, offset = 0x4, fixed_abs, tag = 'smem constant byte address 0x4 - core index']
  #allocation1 [shape = 'u32[144,128]{1,0:T(1,128)}', space=vmem, size = 0x12000, scoped, tag = 'internal scratch']
  #allocation2 [shape = 'f32[24,384]{1,0:T(8,128)}', space=vmem, size = 0x9000, scoped, tag = 'scratch operand']
  %s0 = inlined_call_operand.hbm [shape: f32[24,128], index: 0, kind: input, shape index: {}]
  %s1 = inlined_call_operand.hbm [shape: f32[128,384], index: 1, kind: input, shape index: {}]
  %s2 = inlined_call_operand.vmem [shape: f32[1,384], index: 2, kind: input, shape index: {}]
  %s3 = inlined_call_operand.hbm [shape: f32[24,384], index: 3, kind: output, shape index: {}]
  %s4 = sld [smem:[#allocation0]]
  $region38: #{tpu_custom_call.1} parent=0
    _
  %s6 = ssub.s32 1, %s4
  %s7 = scalar_select 0, %s6, %s4
  $region1: #{tpu_custom_call.1} parent=0
    #allocation3 [shape = 'u8[12288]{0}', space=vmem, size = 0x3000, scoped, tag = 'input window, operand 0, single buffered']
    #allocation4 [shape = 's32[1]{0}', space=sflag, size = 0x4, scoped, tag = 'scoped memory for tpu_custom_call.1']
    #allocation5 [shape = 's32[1]{0}', space=sflag, size = 0x4, scoped, tag = 'scoped memory for tpu_custom_call.1']
    #allocation6 [shape = 'u8[196608]{0}', space=vmem, size = 0x30000, scoped, tag = 'input window, operand 1, single buffered']
    #allocation7 [shape = 's32[1]{0}', space=sflag, size = 0x4, scoped, tag = 'scoped memory for tpu_custom_call.1']
    #allocation8 [shape = 'u8[36864]{0}', space=vmem, size = 0x9000, scoped, tag = 'output window, operand 0, single buffered']
    %8 = vsyncpa [#allocation4], 0
    %9 = vsyncpa [#allocation7], 0
    %10 = vsyncpa [#allocation5], 0
    // Predicated region
    $region2: #{tpu_custom_call.1} parent=1 // pred_check
      _
    $region3: #{tpu_custom_call.1} parent=1 // pred_check_branch
      %12 = sbr.rel (0) target = $region5
    $region4: #{tpu_custom_call.1} parent=1 // pred_region
      %s14 = ssub.s32 384, 384
      %15 = vsyncadd [#allocation4], %s14
      %s16 = sshll.u32 [#allocation3], 4
      %s17 = int_to_ptr.vmem [resolvable:$true] %s16
      %22 = dma.hbm_to_vmem [thread:$0]  %s0, 384, %s17, [#allocation4], 128, 128, 8
    $region5: #{tpu_custom_call.1} parent=1 // pred_fallthru
      _
    // Predicated region
    $region6: #{tpu_custom_call.1} parent=1 // pred_check
      _
    $region7: #{tpu_custom_call.1} parent=1 // pred_check_branch
      %24 = sbr.rel (0) target = $region9
    $region8: #{tpu_custom_call.1} parent=1 // pred_region
      %s26 = ssub.s32 6144, 6144
      %27 = vsyncadd [#allocation7], %s26
      %s28 = sshll.u32 [#allocation6], 4
      %s29 = int_to_ptr.vmem [resolvable:$true] %s28
      %34 = dma.hbm_to_vmem [thread:$0]  %s1, 6144, %s29, [#allocation7], 384, 384, 24
    $region9: #{tpu_custom_call.1} parent=1 // pred_fallthru
      _
    // Predicated region
    $region10: #{tpu_custom_call.1} parent=1 // pred_check
      _
    $region11: #{tpu_custom_call.1} parent=1 // pred_check_branch
      %36 = sbr.rel (0) target = $region13
    $region12: #{tpu_custom_call.1} parent=1 // pred_region
      _
    $region13: #{tpu_custom_call.1} parent=1 // pred_fallthru
      _
    // Predicated region
    $region14: #{tpu_custom_call.1} parent=1 // pred_check
      _
    $region15: #{tpu_custom_call.1} parent=1 // pred_check_branch
      %38 = sbr.rel (0) target = $region17
    $region16: #{tpu_custom_call.1} parent=1 // pred_region
      %39 = dma.done [#allocation4], 384
    $region17: #{tpu_custom_call.1} parent=1 // pred_fallthru
      _
    // Predicated region
    $region18: #{tpu_custom_call.1} parent=1 // pred_check
      _
    $region19: #{tpu_custom_call.1} parent=1 // pred_check_branch
      %41 = sbr.rel (0) target = $region21
    $region20: #{tpu_custom_call.1} parent=1 // pred_region
      %42 = dma.done [#allocation7], 6144
    $region21: #{tpu_custom_call.1} parent=1 // pred_fallthru
      _
    %p43 = scmp.eq.s32.totalorder 0, 0
    // Predicated region
    $region22: #{tpu_custom_call.1} parent=1 // pred_check
      %p44 = pneg %p43
    $region23: #{tpu_custom_call.1} parent=1 // pred_check_branch
      %46 = sbr.rel (%p44) target = $region25
    $region24: #{tpu_custom_call.1} parent=1 // pred_region
      %47 = vst [vmem:[#allocation2] sm:$0xff] 0.0
      %48 = vst [vmem:[#allocation2 + $0x8] sm:$0xff] 0.0
      %49 = vst [vmem:[#allocation2 + $0x10] sm:$0xff] 0.0
      %50 = vst [vmem:[#allocation2 + $0x18] sm:$0xff] 0.0
      %51 = vst [vmem:[#allocation2 + $0x20] sm:$0xff] 0.0
      %52 = vst [vmem:[#allocation2 + $0x28] sm:$0xff] 0.0
      %53 = vst [vmem:[#allocation2 + $0x30] sm:$0xff] 0.0
      %54 = vst [vmem:[#allocation2 + $0x38] sm:$0xff] 0.0
      %55 = vst [vmem:[#allocation2 + $0x40] sm:$0xff] 0.0
    $region25: #{tpu_custom_call.1} parent=1 // pred_fallthru
      _
    %v56 = vld [vmem:[#allocation2] sm:$0xff]
    %v57 = vld [vmem:[#allocation2 + $0x8] sm:$0xff]
    %v58 = vld [vmem:[#allocation2 + $0x10] sm:$0xff]
    %v59 = vld [vmem:[#allocation2 + $0x18] sm:$0xff]
    %v60 = vld [vmem:[#allocation2 + $0x20] sm:$0xff]
    %v61 = vld [vmem:[#allocation2 + $0x28] sm:$0xff]
    %v62 = vld [vmem:[#allocation2 + $0x30] sm:$0xff]
    %v63 = vld [vmem:[#allocation2 + $0x38] sm:$0xff]
    %v64 = vld [vmem:[#allocation2 + $0x40] sm:$0xff]
    %v65 = vld [vmem:[#allocation3] sm:$0xff]
    %v66 = vld [vmem:[#allocation3 + $0x8] sm:$0xff]
    %v67 = vld [vmem:[#allocation3 + $0x10] sm:$0xff]
    %v68 = vld [vmem:[#allocation6] sm:$0xff]
    %v69 = vld [vmem:[#allocation6 + $0x8] sm:$0xff]
    %v70 = vld [vmem:[#allocation6 + $0x10] sm:$0xff]
    %v71 = vld [vmem:[#allocation6 + $0x18] sm:$0xff]
    %v72 = vld [vmem:[#allocation6 + $0x20] sm:$0xff]
    %v73 = vld [vmem:[#allocation6 + $0x28] sm:$0xff]
    %v74 = vld [vmem:[#allocation6 + $0x30] sm:$0xff]
    %v75 = vld [vmem:[#allocation6 + $0x38] sm:$0xff]
    %v76 = vld [vmem:[#allocation6 + $0x40] sm:$0xff]
    %v77 = vld [vmem:[#allocation6 + $0x48] sm:$0xff]
    %v78 = vld [vmem:[#allocation6 + $0x50] sm:$0xff]
    %v79 = vld [vmem:[#allocation6 + $0x58] sm:$0xff]
    %v80 = vld [vmem:[#allocation6 + $0x60] sm:$0xff]
    %v81 = vld [vmem:[#allocation6 + $0x68] sm:$0xff]
    %v82 = vld [vmem:[#allocation6 + $0x70] sm:$0xff]
    %v83 = vld [vmem:[#allocation6 + $0x78] sm:$0xff]
    %v84 = vld [vmem:[#allocation6 + $0x80] sm:$0xff]
    %v85 = vld [vmem:[#allocation6 + $0x88] sm:$0xff]
    %v86 = vld [vmem:[#allocation6 + $0x90] sm:$0xff]
    %v87 = vld [vmem:[#allocation6 + $0x98] sm:$0xff]
    %v88 = vld [vmem:[#allocation6 + $0xa0] sm:$0xff]
    %v89 = vld [vmem:[#allocation6 + $0xa8] sm:$0xff]
    %v90 = vld [vmem:[#allocation6 + $0xb0] sm:$0xff]
    %v91 = vld [vmem:[#allocation6 + $0xb8] sm:$0xff]
    %v92 = vld [vmem:[#allocation6 + $0xc0] sm:$0xff]
    %v93 = vld [vmem:[#allocation6 + $0xc8] sm:$0xff]
    %v94 = vld [vmem:[#allocation6 + $0xd0] sm:$0xff]
    %v95 = vld [vmem:[#allocation6 + $0xd8] sm:$0xff]
    %v96 = vld [vmem:[#allocation6 + $0xe0] sm:$0xff]
    %v97 = vld [vmem:[#allocation6 + $0xe8] sm:$0xff]
    %v98 = vld [vmem:[#allocation6 + $0xf0] sm:$0xff]
    %v99 = vld [vmem:[#allocation6 + $0xf8] sm:$0xff]
    %v100 = vld [vmem:[#allocation6 + $0x100] sm:$0xff]
    %v101 = vld [vmem:[#allocation6 + $0x108] sm:$0xff]
    %v102 = vld [vmem:[#allocation6 + $0x110] sm:$0xff]
    %v103 = vld [vmem:[#allocation6 + $0x118] sm:$0xff]
    %v104 = vld [vmem:[#allocation6 + $0x120] sm:$0xff]
    %v105 = vld [vmem:[#allocation6 + $0x128] sm:$0xff]
    %v106 = vld [vmem:[#allocation6 + $0x130] sm:$0xff]
    %v107 = vld [vmem:[#allocation6 + $0x138] sm:$0xff]
    %v108 = vld [vmem:[#allocation6 + $0x140] sm:$0xff]
    %v109 = vld [vmem:[#allocation6 + $0x148] sm:$0xff]
    %v110 = vld [vmem:[#allocation6 + $0x150] sm:$0xff]
    %v111 = vld [vmem:[#allocation6 + $0x158] sm:$0xff]
    %v112 = vld [vmem:[#allocation6 + $0x160] sm:$0xff]
    %v113 = vld [vmem:[#allocation6 + $0x168] sm:$0xff]
    %v114 = vld [vmem:[#allocation6 + $0x170] sm:$0xff]
    %v115 = vld [vmem:[#allocation6 + $0x178] sm:$0xff]
    %116 = vmatprep.subr.mxu0 %v114
    %117 = vmatpush1.msra.mxu0 %v113
    %118 = vmatprep.subr.mxu0 %v111
    %119 = vmatpush1.msra.mxu0 %v110
    %120 = vmatprep.subr.mxu0 %v108
    %121 = vmatpush1.msra.mxu0 %v107
    %122 = vmatprep.subr.mxu0 %v105
    %123 = vmatpush1.msra.mxu0 %v104
    %124 = vmatprep.subr.mxu0 %v102
    %125 = vmatpush1.msra.mxu0 %v101
    %126 = vmatprep.subr.mxu0 %v99
    %127 = vmatpush1.msra.mxu0 %v98
    %128 = vmatprep.subr.mxu0 %v96
    %129 = vmatpush1.msra.mxu0 %v95
    %130 = vmatprep.subr.mxu0 %v93
    %131 = vmatpush1.msra.mxu0 %v92
    %132 = vmatprep.subr.mxu0 %v90
    %133 = vmatpush1.msra.mxu0 %v89
    %134 = vmatprep.subr.mxu0 %v87
    %135 = vmatpush1.msra.mxu0 %v86
    %136 = vmatprep.subr.mxu0 %v84
    %137 = vmatpush1.msra.mxu0 %v83
    %138 = vmatprep.subr.mxu0 %v81
    %139 = vmatpush1.msra.mxu0 %v80
    %140 = vmatprep.subr.mxu0 %v78
    %141 = vmatpush1.msra.mxu0 %v77
    %142 = vmatprep.subr.mxu0 %v75
    %143 = vmatpush1.msra.mxu0 %v74
    %144 = vmatprep.subr.mxu0 %v72
    %145 = vmatpush1.msra.mxu0 %v71
    %146 = vmatprep.subr.mxu0 %v69
    %147 = vmatpush1.msra.mxu0 %v68
    %148 = vmatprep.subr.mxu0 0.0
    %149 = vmatpush2.msra.mxu0 0.0
    %150 = vmatprep.subr.mxu0 0.0
    %151 = vmatpush2.msra.mxu0 0.0
    %152 = vmatprep.subr.mxu0 0.0
    %153 = vmatpush2.msra.mxu0 0.0
    %154 = vmatprep.subr.mxu0 0.0
    %155 = vmatpush2.msra.mxu0 0.0
    %156 = vmatprep.subr.mxu0 0.0
    %157 = vmatpush2.msra.mxu0 0.0
    %158 = vmatprep.subr.mxu0 0.0
    %159 = vmatpush2.msra.mxu0 0.0
    %160 = vmatprep.subr.mxu0 0.0
    %161 = vmatpush2.msra.mxu0 0.0
    %162 = vmatprep.subr.mxu0 0.0
    %163 = vmatpush2.msra.mxu0 0.0
    %164 = vmatprep.subr.mxu0 0.0
    %165 = vmatpush2.msra.mxu0 0.0
    %166 = vmatprep.subr.mxu0 0.0
    %167 = vmatpush2.msra.mxu0 0.0
    %168 = vmatprep.subr.mxu0 0.0
    %169 = vmatpush2.msra.mxu0 0.0
    %170 = vmatprep.subr.mxu0 0.0
    %171 = vmatpush2.msra.mxu0 0.0
    %172 = vmatprep.subr.mxu0 0.0
    %173 = vmatpush2.msra.mxu0 0.0
    %174 = vmatprep.subr.mxu0 0.0
    %175 = vmatpush2.msra.mxu0 0.0
    %176 = vmatprep.subr.mxu0 0.0
    %177 = vmatpush2.msra.mxu0 0.0
    %178 = vmatprep.subr.mxu0 0.0
    %179 = vmatpush2.msra.mxu0 0.0
    %180 = vmatprep.mubr.f32.mxu0 0.0
    %181 = vmatmul.mubr.f32.gmra.mxu0 %v65
    %v182 = vpop.f32.mrf.mxu0
    %v183 = vadd.f32 0.0, %v182
    %v184 = vpop.f32.mrf.mxu0
    %v185 = vadd.f32 0.0, %v184
    %186 = vmatprep.mubr.f32.mxu0 0.0
    %187 = vmatmul.mubr.f32.gmra.mxu0 %v66
    %v188 = vpop.f32.mrf.mxu0
    %v189 = vadd.f32 0.0, %v188
    %v190 = vpop.f32.mrf.mxu0
    %v191 = vadd.f32 0.0, %v190
    %192 = vmatprep.mubr.f32.mxu0 0.0
    %193 = vmatmul.mubr.f32.gmra.mxu0 %v67
    %v194 = vpop.f32.mrf.mxu0
    %v195 = vadd.f32 0.0, %v194
    %v196 = vpop.f32.mrf.mxu0
    %v197 = vadd.f32 0.0, %v196
    %198 = vdwg.mxu0
    %199 = vmatprep.subr.mxu0 0.0
    %200 = vmatpush1.msra.mxu0 %v115
    %201 = vmatprep.subr.mxu0 0.0
    %202 = vmatpush1.msra.mxu0 %v112
    %203 = vmatprep.subr.mxu0 0.0
    %204 = vmatpush1.msra.mxu0 %v109
    %205 = vmatprep.subr.mxu0 0.0
    %206 = vmatpush1.msra.mxu0 %v106
    %207 = vmatprep.subr.mxu0 0.0
    %208 = vmatpush1.msra.mxu0 %v103
    %209 = vmatprep.subr.mxu0 0.0
    %210 = vmatpush1.msra.mxu0 %v100
    %211 = vmatprep.subr.mxu0 0.0
    %212 = vmatpush1.msra.mxu0 %v97
    %213 = vmatprep.subr.mxu0 0.0
    %214 = vmatpush1.msra.mxu0 %v94
    %215 = vmatprep.subr.mxu0 0.0
    %216 = vmatpush1.msra.mxu0 %v91
    %217 = vmatprep.subr.mxu0 0.0
    %218 = vmatpush1.msra.mxu0 %v88
    %219 = vmatprep.subr.mxu0 0.0
    %220 = vmatpush1.msra.mxu0 %v85
    %221 = vmatprep.subr.mxu0 0.0
    %222 = vmatpush1.msra.mxu0 %v82
    %223 = vmatprep.subr.mxu0 0.0
    %224 = vmatpush1.msra.mxu0 %v79
    %225 = vmatprep.subr.mxu0 0.0
    %226 = vmatpush1.msra.mxu0 %v76
    %227 = vmatprep.subr.mxu0 0.0
    %228 = vmatpush1.msra.mxu0 %v73
    %229 = vmatprep.subr.mxu0 0.0
    %230 = vmatpush1.msra.mxu0 %v70
    %231 = vmatprep.subr.mxu0 0.0
    %232 = vmatpush2.msra.mxu0 0.0
    %233 = vmatprep.subr.mxu0 0.0
    %234 = vmatpush2.msra.mxu0 0.0
    %235 = vmatprep.subr.mxu0 0.0
    %236 = vmatpush2.msra.mxu0 0.0
    %237 = vmatprep.subr.mxu0 0.0
    %238 = vmatpush2.msra.mxu0 0.0
    %239 = vmatprep.subr.mxu0 0.0
    %240 = vmatpush2.msra.mxu0 0.0
    %241 = vmatprep.subr.mxu0 0.0
    %242 = vmatpush2.msra.mxu0 0.0
    %243 = vmatprep.subr.mxu0 0.0
    %244 = vmatpush2.msra.mxu0 0.0
    %245 = vmatprep.subr.mxu0 0.0
    %246 = vmatpush2.msra.mxu0 0.0
    %247 = vmatprep.subr.mxu0 0.0
    %248 = vmatpush2.msra.mxu0 0.0
    %249 = vmatprep.subr.mxu0 0.0
    %250 = vmatpush2.msra.mxu0 0.0
    %251 = vmatprep.subr.mxu0 0.0
    %252 = vmatpush2.msra.mxu0 0.0
    %253 = vmatprep.subr.mxu0 0.0
    %254 = vmatpush2.msra.mxu0 0.0
    %255 = vmatprep.subr.mxu0 0.0
    %256 = vmatpush2.msra.mxu0 0.0
    %257 = vmatprep.subr.mxu0 0.0
    %258 = vmatpush2.msra.mxu0 0.0
    %259 = vmatprep.subr.mxu0 0.0
    %260 = vmatpush2.msra.mxu0 0.0
    %261 = vmatprep.subr.mxu0 0.0
    %262 = vmatpush2.msra.mxu0 0.0
    %263 = vmatprep.mubr.f32.mxu0 0.0
    %264 = vmatmul.mubr.f32.gmra.mxu0 %v65
    %v265 = vpop.f32.mrf.mxu0
    %v266 = vadd.f32 0.0, %v265
    %v267 = vpop.f32.mrf.mxu0
    %268 = vmatprep.mubr.f32.mxu0 0.0
    %269 = vmatmul.mubr.f32.gmra.mxu0 %v66
    %v270 = vpop.f32.mrf.mxu0
    %v271 = vadd.f32 0.0, %v270
    %v272 = vpop.f32.mrf.mxu0
    %273 = vmatprep.mubr.f32.mxu0 0.0
    %274 = vmatmul.mubr.f32.gmra.mxu0 %v67
    %v275 = vpop.f32.mrf.mxu0
    %v276 = vadd.f32 0.0, %v275
    %v277 = vpop.f32.mrf.mxu0
    %278 = vdwg.mxu0
    %v279 = vadd.f32 %v56, %v183
    %v280 = vadd.f32 %v57, %v185
    %v281 = vadd.f32 %v58, %v266
    %v282 = vadd.f32 %v59, %v189
    %v283 = vadd.f32 %v60, %v191
    %v284 = vadd.f32 %v61, %v271
    %v285 = vadd.f32 %v62, %v195
    %v286 = vadd.f32 %v63, %v197
    %v287 = vadd.f32 %v64, %v276
    %288 = vst [vmem:[#allocation2] sm:$0xff] %v279
    %289 = vst [vmem:[#allocation2 + $0x8] sm:$0xff] %v280
    %290 = vst [vmem:[#allocation2 + $0x10] sm:$0xff] %v281
    %291 = vst [vmem:[#allocation2 + $0x18] sm:$0xff] %v282
    %292 = vst [vmem:[#allocation2 + $0x20] sm:$0xff] %v283
    %293 = vst [vmem:[#allocation2 + $0x28] sm:$0xff] %v284
    %294 = vst [vmem:[#allocation2 + $0x30] sm:$0xff] %v285
    %295 = vst [vmem:[#allocation2 + $0x38] sm:$0xff] %v286
    %296 = vst [vmem:[#allocation2 + $0x40] sm:$0xff] %v287
    // Predicated region
    $region26: #{tpu_custom_call.1} parent=1 // pred_check
      %p297 = pneg %p43
    $region27: #{tpu_custom_call.1} parent=1 // pred_check_branch
      %299 = sbr.rel (%p297) target = $region29
    $region28: #{tpu_custom_call.1} parent=1 // pred_region
      %v300 = vld [vmem:[#allocation2] sm:$0xff]
      %v301 = vld [vmem:[#allocation2 + $0x8] sm:$0xff]
      %v302 = vld [vmem:[#allocation2 + $0x10] sm:$0xff]
      %v303 = vld [vmem:[#allocation2 + $0x18] sm:$0xff]
      %v304 = vld [vmem:[#allocation2 + $0x20] sm:$0xff]
      %v305 = vld [vmem:[#allocation2 + $0x28] sm:$0xff]
      %v306 = vld [vmem:[#allocation2 + $0x30] sm:$0xff]
      %v307 = vld [vmem:[#allocation2 + $0x38] sm:$0xff]
      %v308 = vld [vmem:[#allocation2 + $0x40] sm:$0xff]
      %v309 = vld [vmem:[%s2] sm:$0x7]
      %v311 = vlaneseq
      %v312 = vshrl.u32 %v311, 7
      %v313 = vsub.s32 0, %v312
      %v314 = vrot.slane %v309, %v313
      %v315 = vlaneseq
      %v316 = vshrl.u32 %v315, 7
      %v317 = vsub.s32 1, %v316
      %v318 = vrot.slane %v309, %v317
      %v319 = vlaneseq
      %v320 = vshrl.u32 %v319, 7
      %v321 = vsub.s32 2, %v320
      %v322 = vrot.slane %v309, %v321
      %v326 = vadd.f32 %v300, %v314
      %v327 = vadd.f32 %v301, %v318
      %v328 = vadd.f32 %v302, %v322
      %v329 = vadd.f32 %v303, %v314
      %v330 = vadd.f32 %v304, %v318
      %v331 = vadd.f32 %v305, %v322
      %v332 = vadd.f32 %v306, %v314
      %v333 = vadd.f32 %v307, %v318
      %v334 = vadd.f32 %v308, %v322
      %335 = vst [vmem:[#allocation8] sm:$0xff] %v326
      %336 = vst [vmem:[#allocation8 + $0x8] sm:$0xff] %v327
      %337 = vst [vmem:[#allocation8 + $0x10] sm:$0xff] %v328
      %338 = vst [vmem:[#allocation8 + $0x18] sm:$0xff] %v329
      %339 = vst [vmem:[#allocation8 + $0x20] sm:$0xff] %v330
      %340 = vst [vmem:[#allocation8 + $0x28] sm:$0xff] %v331
      %341 = vst [vmem:[#allocation8 + $0x30] sm:$0xff] %v332
      %342 = vst [vmem:[#allocation8 + $0x38] sm:$0xff] %v333
      %343 = vst [vmem:[#allocation8 + $0x40] sm:$0xff] %v334
    $region29: #{tpu_custom_call.1} parent=1 // pred_fallthru
      _
    // Predicated region
    $region30: #{tpu_custom_call.1} parent=1 // pred_check
      _
    $region31: #{tpu_custom_call.1} parent=1 // pred_check_branch
      %345 = sbr.rel (0) target = $region33
    $region32: #{tpu_custom_call.1} parent=1 // pred_region
      %s347 = ssub.s32 1152, 1152
      %348 = vsyncadd [#allocation5], %s347
      %s349 = sshll.u32 [#allocation8], 4
      %s350 = int_to_ptr.vmem [resolvable:$true] %s349
      %355 = dma.vmem_to_hbm [thread:$0]  %s350, 1152, %s3, [#allocation5], 384, 384, 24
    $region33: #{tpu_custom_call.1} parent=1 // pred_fallthru
      _
    // Predicated region
    $region34: #{tpu_custom_call.1} parent=1 // pred_check
      _
    $region35: #{tpu_custom_call.1} parent=1 // pred_check_branch
      %357 = sbr.rel (0) target = $region37
    $region36: #{tpu_custom_call.1} parent=1 // pred_region
      %358 = dma.done [#allocation5], 1152
    $region37: #{tpu_custom_call.1} parent=1 // pred_fallthru
      _
    %359 = vsyncpa [#allocation4], 1
    %360 = vsyncpa [#allocation7], 1
    %361 = vsyncpa [#allocation5], 1

</llo_original>
